<compile_context>
chip_gen: v7x
topology: tpu7x:2x2x1
jax: 0.10.0
libtpu: 0.0.40
codegen_flags: <defaults>
</compile_context>

<pallas_src>
import functools
import math

import jax
import jax.numpy as jnp
from jax import lax
from jax.experimental import pallas as pl
from jax.experimental.pallas import tpu as pltpu

_EPS = 1e-8
_LANES = 128


# ----------------------------- Pallas kernel -------------------------------
def _intra_kernel(coef_ref, f_ref, corr_ref, ratio_ref, *,
                  tt, t_valid, eps_b, eps_k, inv_c, inv_km1, need_mask):
    # f_ref   : (1, C, TT) feature tile, native NCT layout (time on lanes)
    # coef_ref: (C, 4)  [a_corr/sqrt(B), a_all/sqrt(K), a_corr/eps, a_all/eps]
    f = f_ref[0]                              # (C, TT)
    a_corr = coef_ref[:, 0:1]                 # (C, 1), broadcast along lanes
    a_all = coef_ref[:, 1:2]
    b_corr = coef_ref[:, 2:3]
    b_all = coef_ref[:, 3:4]

    absf = jnp.abs(f)
    # sign(f); value at f == 0 is irrelevant (that case takes the clamped branch).
    sgn = jnp.where(f >= 0.0, 1.0, -1.0)

    # f * a / max(sqrt(M)*|f|, eps)  with the eps clamp at the exact torch position,
    # but with zero per-element divides (constants folded into coef).
    cos_corr = jnp.where(absf >= eps_b, sgn * a_corr, f * b_corr)   # (C, TT)
    cos_all = jnp.where(absf >= eps_k, sgn * a_all, f * b_all)      # (C, TT)

    # 1 - cos.mean(-1): mean over the feature axis == sublane reduction.
    corr = 1.0 - jnp.sum(cos_corr, axis=0, keepdims=True) * inv_c   # (1, TT)
    alld = 1.0 - jnp.sum(cos_all, axis=0, keepdims=True) * inv_c    # (1, TT)

    incorrect = (alld - corr) * inv_km1       # K==1 -> inf, matches torch div-by-0
    ratio = corr / incorrect                  # same (un-guarded) semantics as torch

    if need_mask:
        # Mask lanes that belong to the zero-padded time tail.
        t_idx = pl.program_id(1)
        lane = lax.broadcasted_iota(jnp.int32, (1, tt), 1)
        valid = (t_idx * tt + lane) < t_valid
        corr = jnp.where(valid, corr, 0.0)
        ratio = jnp.where(valid, ratio, 0.0)

    # Per-tile partial sums (lane reduction); write one lane-dense 128-wide row.
    corr_sum = jnp.sum(corr, axis=1, keepdims=True)                 # (1, 1)
    ratio_sum = jnp.sum(ratio, axis=1, keepdims=True)               # (1, 1)
    corr_ref[...] = jnp.broadcast_to(corr_sum.reshape(1, 1, 1, 1), (1, 1, 1, _LANES))
    ratio_ref[...] = jnp.broadcast_to(ratio_sum.reshape(1, 1, 1, 1), (1, 1, 1, _LANES))


# ----------------------------- tile selection -------------------------------
def _pick_time_tile(t_pad, n, c):
    """Largest lane-dense multiple of 128 dividing t_pad within a VMEM budget."""
    # ~2 double-buffered input tiles + ~6 live (C, TT) f32 temporaries must stay
    # well under v7x's 64 MiB physical VMEM (32 MiB scoped default).
    vmem_budget = 24 * 1024 * 1024
    live_factor = 8
    cap = max(_LANES, vmem_budget // (live_factor * 4 * c))
    cap = min(cap, 4096, t_pad)
    if n == 1 and t_pad >= 2 * _LANES:
        cap = min(cap, t_pad // 2)   # keep >=2 parallel grid steps (v7x: 2 TCs)
    cap = max(_LANES, (cap // _LANES) * _LANES)
    for cand in range(cap, 0, -_LANES):
        if t_pad % cand == 0:
            return cand
    return _LANES


# ------------------------------- wrapper ------------------------------------
def intra_distance_loss(features, labels, centers, lambda_intra=0.1, eps=_EPS):
    """features: (N, C, T) float, labels: (N, T) int, centers: (K, C) float."""
    N, C, T = features.shape
    K, C2 = centers.shape
    assert C == C2
    B = N * T

    features = features.astype(jnp.float32)
    centers = centers.astype(jnp.float32)

    # --- tiny per-class prep (replaces the one-hot @ centers MXU gather) -----
    counts = jnp.bincount(
        labels.reshape(-1).astype(jnp.int32), length=K).astype(jnp.float32)   # (K,)
    s_corr = counts @ centers                                                  # (C,)
    n_corr = jnp.sqrt(counts @ (centers * centers))                            # (C,)
    s_all = jnp.sum(centers, axis=0)                                           # (C,)
    n_all = jnp.sqrt(jnp.sum(centers * centers, axis=0))                       # (C,)
    a_corr = s_corr / jnp.maximum(n_corr, eps)
    a_all = s_all / jnp.maximum(n_all, eps)
    # Fold 1/sqrt(M) and 1/eps scales here so the kernel needs no per-element
    # divides and no per-element loop-invariant multiplies.
    coef = jnp.stack([a_corr / math.sqrt(B),
                      a_all / math.sqrt(K),
                      a_corr / eps,
                      a_all / eps], axis=1)                                    # (C, 4)

    # --- pad time to a multiple of 128; padded lanes are masked in-kernel ----
    t_pad = ((T + _LANES - 1) // _LANES) * _LANES
    if t_pad != T:
        features = jnp.pad(features, ((0, 0), (0, 0), (0, t_pad - T)))

    tt = _pick_time_tile(t_pad, N, C)
    assert t_pad % tt == 0
    n_t = t_pad // tt
    grid = (N, n_t)

    kernel = functools.partial(
        _intra_kernel,
        tt=tt,
        t_valid=T,
        eps_b=float(eps / math.sqrt(B)),
        eps_k=float(eps / math.sqrt(K)),
        inv_c=float(1.0 / C),
        inv_km1=float(1.0 / (K - 1)) if K > 1 else float("inf"),
        need_mask=(t_pad != T),
    )

    tile_bytes = C * tt * 4
    # Explicit VMEM limit (v5e scoped default is only 16 MiB); capped so it also
    # fits comfortably inside v7x's 64 MiB physical VMEM.
    vmem_limit = int(min(48 * 1024 * 1024, max(32 * 1024 * 1024, 12 * tile_bytes)))

    corr_part, ratio_part = pl.pallas_call(
        kernel,
        grid=grid,
        in_specs=[
            pl.BlockSpec((C, 4), lambda n, t: (0, 0)),           # coef (grid-invariant)
            pl.BlockSpec((1, C, tt), lambda n, t: (n, 0, t)),    # feature tile (NCT)
        ],
        out_specs=(
            pl.BlockSpec((1, 1, 1, _LANES), lambda n, t: (n, t, 0, 0)),
            pl.BlockSpec((1, 1, 1, _LANES), lambda n, t: (n, t, 0, 0)),
        ),
        out_shape=(
            jax.ShapeDtypeStruct((N, n_t, 1, _LANES), jnp.float32),   # sum(correct) / tile
            jax.ShapeDtypeStruct((N, n_t, 1, _LANES), jnp.float32),   # sum(ratio)   / tile
        ),
        compiler_params=pltpu.CompilerParams(
            dimension_semantics=("parallel", "parallel"),
            vmem_limit_bytes=vmem_limit),
    )(coef, features)

    # Final tiny reduction over per-tile partial sums (plain JAX) — matches
    # torch's ratio_loss.mean() + lambda * correct_distances.mean().
    corr_total = jnp.sum(corr_part[..., 0])
    ratio_total = jnp.sum(ratio_part[..., 0])
    return ratio_total / B + jnp.float32(lambda_intra) * (corr_total / B)


# --------------------------- pure-JAX reference ------------------------------
def _cosine_distance_ref(x1, x2, eps=_EPS):
    # literal torch semantics: broadcast, cosine along dim=1, mean over last dim
    B, D = x1.shape
    M = x2.shape[0]
    x1b = jnp.broadcast_to(x1[:, None, :], (B, M, D))
    x2b = jnp.broadcast_to(x2[None, :, :], (B, M, D))
    n1 = jnp.maximum(jnp.linalg.norm(x1b, axis=1, keepdims=True), eps)
    n2 = jnp.maximum(jnp.linalg.norm(x2b, axis=1, keepdims=True), eps)
    cos = jnp.sum((x1b / n1) * (x2b / n2), axis=1)  # (B, D)
    return 1.0 - cos.mean(-1)


def intra_distance_loss_ref(features, labels, centers, lambda_intra=0.1):
    N, C, T = features.shape
    K = centers.shape[0]
    f2 = jnp.transpose(features, (0, 2, 1)).reshape(-1, C)
    lab = labels.reshape(-1)
    cb = centers[lab]
    correct = _cosine_distance_ref(f2, cb)
    alld = _cosine_distance_ref(f2, centers)
    incorrect = (alld - correct) / (K - 1)
    ratio = correct / incorrect
    return ratio.mean() + lambda_intra * correct.mean()


# --------------------------------- main --------------------------------------
if __name__ == "__main__":
    num_classes = 4
    feature_dim = 32
    batch, seq = 2, 8
    lambda_intra = 0.1

    key = jax.random.PRNGKey(0)
    k1, k2, k3 = jax.random.split(key, 3)

    # deterministic "parameter" init (torch.randn(num_classes, feature_dim))
    centers = jax.random.normal(k1, (num_classes, feature_dim), dtype=jnp.float32)

    features = jax.random.normal(k2, (batch, feature_dim, seq), dtype=jnp.float32)
    labels = jax.random.randint(k3, (batch, seq), 0, num_classes, dtype=jnp.int32)

    loss = intra_distance_loss(features, labels, centers, lambda_intra)
    loss = jax.block_until_ready(loss)

    ref = intra_distance_loss_ref(features, labels, centers, lambda_intra)
    ref = jax.block_until_ready(ref)

    assert jnp.isfinite(loss), "kernel produced non-finite loss"
    # ratio = correct / incorrect massively amplifies fp rounding noise
    # (loss ~3e3 at this seed), so compare with a relative tolerance.
    rel = abs(float(loss) - float(ref)) / max(1.0, abs(float(ref)))
    assert rel < 2e-3, (float(loss), float(ref), rel)
    print("KERNEL_OK")
</pallas_src>

<mosaic_0001>
module attributes {stable_mosaic.version = 11 : i64} {
  func.func @_intra_kernel(%arg0: i32, %arg1: i32, %arg2: memref<32x4xf32, #tpu.memory_space<vmem>>, %arg3: memref<1x32x128xf32, #tpu.memory_space<vmem>>, %arg4: memref<1x1x1x128xf32, #tpu.memory_space<vmem>>, %arg5: memref<1x1x1x128xf32, #tpu.memory_space<vmem>>) attributes {dimension_semantics = [#tpu.dimension_semantics<parallel>, #tpu.dimension_semantics<parallel>], iteration_bounds = array<i64: 2, 1>, scalar_prefetch = 0 : i64, scratch_operands = 0 : i64, tpu.core_type = #tpu.core_type<tc>, window_params = [{pipeline_mode = #tpu.pipeline_mode<synchronous>, transform_indices = @transform_0, window_bounds = array<i64: 32, 4>}, {transform_indices = @transform_1, window_bounds = array<i64: 1, 32, 128>}, {transform_indices = @transform_2, window_bounds = array<i64: 1, 1, 1, 128>}, {transform_indices = @transform_3, window_bounds = array<i64: 1, 1, 1, 128>}]} {
    %c0 = arith.constant 0 : index
    %c0_0 = arith.constant 0 : index
    %c0_1 = arith.constant 0 : index
    %0 = vector.load %arg3[%c0, %c0_0, %c0_1] : memref<1x32x128xf32, #tpu.memory_space<vmem>>, vector<1x32x128xf32>
    %1 = vector.shape_cast %0 : vector<1x32x128xf32> to vector<32x128xf32>
    %c0_2 = arith.constant 0 : index
    %c0_3 = arith.constant 0 : index
    %2 = vector.load %arg2[%c0_2, %c0_3] : memref<32x4xf32, #tpu.memory_space<vmem>>, vector<32x1xf32>
    %c0_4 = arith.constant 0 : index
    %c1 = arith.constant 1 : index
    %3 = vector.load %arg2[%c0_4, %c1] : memref<32x4xf32, #tpu.memory_space<vmem>>, vector<32x1xf32>
    %c0_5 = arith.constant 0 : index
    %c2 = arith.constant 2 : index
    %4 = vector.load %arg2[%c0_5, %c2] : memref<32x4xf32, #tpu.memory_space<vmem>>, vector<32x1xf32>
    %c0_6 = arith.constant 0 : index
    %c3 = arith.constant 3 : index
    %5 = vector.load %arg2[%c0_6, %c3] : memref<32x4xf32, #tpu.memory_space<vmem>>, vector<32x1xf32>
    %6 = math.absf %1 : vector<32x128xf32>
    %cst = arith.constant 0.000000e+00 : f32
    %7 = vector.broadcast %cst : f32 to vector<32x128xf32>
    %8 = arith.cmpf oge, %1, %7 : vector<32x128xf32>
    %cst_7 = arith.constant 1.000000e+00 : f32
    %cst_8 = arith.constant -1.000000e+00 : f32
    %9 = vector.broadcast %cst_7 : f32 to vector<32x128xf32>
    %10 = vector.broadcast %cst_8 : f32 to vector<32x128xf32>
    %11 = arith.select %8, %9, %10 : vector<32x128xi1>, vector<32x128xf32>
    %cst_9 = arith.constant 2.500000e-09 : f32
    %12 = vector.broadcast %cst_9 : f32 to vector<32x128xf32>
    %13 = arith.cmpf oge, %6, %12 : vector<32x128xf32>
    %14 = vector.broadcast %2 : vector<32x1xf32> to vector<32x128xf32>
    %15 = arith.mulf %11, %14 : vector<32x128xf32>
    %16 = vector.broadcast %4 : vector<32x1xf32> to vector<32x128xf32>
    %17 = arith.mulf %1, %16 : vector<32x128xf32>
    %18 = arith.select %13, %15, %17 : vector<32x128xi1>, vector<32x128xf32>
    %cst_10 = arith.constant 5.000000e-09 : f32
    %19 = vector.broadcast %cst_10 : f32 to vector<32x128xf32>
    %20 = arith.cmpf oge, %6, %19 : vector<32x128xf32>
    %21 = vector.broadcast %3 : vector<32x1xf32> to vector<32x128xf32>
    %22 = arith.mulf %11, %21 : vector<32x128xf32>
    %23 = vector.broadcast %5 : vector<32x1xf32> to vector<32x128xf32>
    %24 = arith.mulf %1, %23 : vector<32x128xf32>
    %25 = arith.select %20, %22, %24 : vector<32x128xi1>, vector<32x128xf32>
    %cst_11 = arith.constant dense<0.000000e+00> : vector<128xf32>
    %26 = vector.multi_reduction <add>, %18, %cst_11 [0] : vector<32x128xf32> to vector<128xf32>
    %27 = vector.shape_cast %26 : vector<128xf32> to vector<1x128xf32>
    %cst_12 = arith.constant 3.125000e-02 : f32
    %28 = vector.broadcast %cst_12 : f32 to vector<1x128xf32>
    %29 = arith.mulf %27, %28 : vector<1x128xf32>
    %cst_13 = arith.constant 1.000000e+00 : f32
    %30 = vector.broadcast %cst_13 : f32 to vector<1x128xf32>
    %31 = arith.subf %30, %29 : vector<1x128xf32>
    %cst_14 = arith.constant dense<0.000000e+00> : vector<128xf32>
    %32 = vector.multi_reduction <add>, %25, %cst_14 [0] : vector<32x128xf32> to vector<128xf32>
    %33 = vector.shape_cast %32 : vector<128xf32> to vector<1x128xf32>
    %cst_15 = arith.constant 3.125000e-02 : f32
    %34 = vector.broadcast %cst_15 : f32 to vector<1x128xf32>
    %35 = arith.mulf %33, %34 : vector<1x128xf32>
    %cst_16 = arith.constant 1.000000e+00 : f32
    %36 = vector.broadcast %cst_16 : f32 to vector<1x128xf32>
    %37 = arith.subf %36, %35 : vector<1x128xf32>
    %38 = arith.subf %37, %31 : vector<1x128xf32>
    %cst_17 = arith.constant 0.333333343 : f32
    %39 = vector.broadcast %cst_17 : f32 to vector<1x128xf32>
    %40 = arith.mulf %38, %39 : vector<1x128xf32>
    %41 = arith.divf %31, %40 : vector<1x128xf32>
    %42 = tpu.iota {dimensions = array<i32: 1>} : vector<1x128xi32>
    %c128_i32 = arith.constant 128 : i32
    %43 = arith.muli %arg1, %c128_i32 : i32
    %44 = vector.broadcast %43 : i32 to vector<1x128xi32>
    %45 = arith.addi %44, %42 : vector<1x128xi32>
    %c8_i32 = arith.constant 8 : i32
    %46 = vector.broadcast %c8_i32 : i32 to vector<1x128xi32>
    %47 = arith.cmpi slt, %45, %46 : vector<1x128xi32>
    %cst_18 = arith.constant 0.000000e+00 : f32
    %48 = vector.broadcast %cst_18 : f32 to vector<1x128xf32>
    %49 = arith.select %47, %31, %48 : vector<1x128xi1>, vector<1x128xf32>
    %cst_19 = arith.constant 0.000000e+00 : f32
    %50 = vector.broadcast %cst_19 : f32 to vector<1x128xf32>
    %51 = arith.select %47, %41, %50 : vector<1x128xi1>, vector<1x128xf32>
    %cst_20 = arith.constant dense<0.000000e+00> : vector<1xf32>
    %52 = vector.multi_reduction <add>, %49, %cst_20 [1] : vector<1x128xf32> to vector<1xf32>
    %53 = vector.shape_cast %52 : vector<1xf32> to vector<1x1xf32>
    %cst_21 = arith.constant dense<0.000000e+00> : vector<1xf32>
    %54 = vector.multi_reduction <add>, %51, %cst_21 [1] : vector<1x128xf32> to vector<1xf32>
    %55 = vector.shape_cast %54 : vector<1xf32> to vector<1x1xf32>
    %56 = vector.shape_cast %53 : vector<1x1xf32> to vector<1x1x1x1xf32>
    %57 = vector.shape_cast %56 : vector<1x1x1x1xf32> to vector<1x1x1x1xf32>
    %58 = vector.broadcast %57 : vector<1x1x1x1xf32> to vector<1x1x1x128xf32>
    %c0_22 = arith.constant 0 : index
    %c0_23 = arith.constant 0 : index
    %c0_24 = arith.constant 0 : index
    %c0_25 = arith.constant 0 : index
    %59 = vector.load %arg4[%c0_22, %c0_23, %c0_24, %c0_25] : memref<1x1x1x128xf32, #tpu.memory_space<vmem>>, vector<1x1x1x128xf32>
    tpu.vector_store %arg4[%c0_22, %c0_23, %c0_24, %c0_25], %58 {strides = array<i32>} : memref<1x1x1x128xf32, #tpu.memory_space<vmem>>, vector<1x1x1x128xf32>,
    %60 = vector.shape_cast %55 : vector<1x1xf32> to vector<1x1x1x1xf32>
    %61 = vector.shape_cast %60 : vector<1x1x1x1xf32> to vector<1x1x1x1xf32>
    %62 = vector.broadcast %61 : vector<1x1x1x1xf32> to vector<1x1x1x128xf32>
    %c0_26 = arith.constant 0 : index
    %c0_27 = arith.constant 0 : index
    %c0_28 = arith.constant 0 : index
    %c0_29 = arith.constant 0 : index
    %63 = vector.load %arg5[%c0_26, %c0_27, %c0_28, %c0_29] : memref<1x1x1x128xf32, #tpu.memory_space<vmem>>, vector<1x1x1x128xf32>
    tpu.vector_store %arg5[%c0_26, %c0_27, %c0_28, %c0_29], %62 {strides = array<i32>} : memref<1x1x1x128xf32, #tpu.memory_space<vmem>>, vector<1x1x1x128xf32>,
    return
  }
  func.func @transform_0(%arg0: i32, %arg1: i32) -> (i32, i32) {
    %c0_i32 = arith.constant 0 : i32
    %c0_i32_0 = arith.constant 0 : i32
    %c0_i32_1 = arith.constant 0 : i32
    return %c0_i32, %c0_i32_0 : i32, i32
  }
  func.func @transform_1(%arg0: i32, %arg1: i32) -> (i32, i32, i32) {
    %c0_i32 = arith.constant 0 : i32
    %c0_i32_0 = arith.constant 0 : i32
    return %arg0, %c0_i32, %arg1 : i32, i32, i32
  }
  func.func @transform_2(%arg0: i32, %arg1: i32) -> (i32, i32, i32, i32) {
    %c0_i32 = arith.constant 0 : i32
    %c0_i32_0 = arith.constant 0 : i32
    %c0_i32_1 = arith.constant 0 : i32
    return %arg0, %arg1, %c0_i32, %c0_i32_0 : i32, i32, i32, i32
  }
  func.func @transform_3(%arg0: i32, %arg1: i32) -> (i32, i32, i32, i32) {
    %c0_i32 = arith.constant 0 : i32
    %c0_i32_0 = arith.constant 0 : i32
    %c0_i32_1 = arith.constant 0 : i32
    return %arg0, %arg1, %c0_i32, %c0_i32_0 : i32, i32, i32, i32
  }
}

</mosaic_0001>

<llo_original>
// kernel: tpu_custom_call.1
$region0: #{tpu_custom_call.1}
  #allocation0 [shape = 'u32[]', space=smem, size = 0x4, offset = 0x4, fixed_abs, tag = 'smem constant byte address 0x4 - core index']
  #allocation1 [shape = 'u32[144,128]{1,0:T(1,128)}', space=vmem, size = 0x12000, scoped, tag = 'internal scratch']
  %s0 = inlined_call_operand.vmem [shape: f32[32,4], index: 0, kind: input, shape index: {}]
  %s1 = inlined_call_operand.hbm [shape: f32[2,32,128], index: 1, kind: input, shape index: {}]
  %s2 = inlined_call_operand.hbm [shape: f32[2,1,1,128], index: 2, kind: output, shape index: {0}]
  %s3 = inlined_call_operand.hbm [shape: f32[2,1,1,128], index: 3, kind: output, shape index: {1}]
  %4 = xla_tuple %s2, %s3
  %s5 = sld [smem:[#allocation0]]
  $region53: #{tpu_custom_call.1} parent=0
    _
  %s7 = ssub.s32 1, %s5
  %s8 = scalar_select 0, %s7, %s5
  $region1: #{tpu_custom_call.1} parent=0
    #allocation2 [shape = 'u8[32768]{0}', space=vmem, size = 0x8000, scoped, tag = 'input window, operand 1']
    #allocation3 [shape = 's32[2]{0}', space=sflag, size = 0x8, scoped, tag = 'scoped memory for tpu_custom_call.1']
    #allocation4 [shape = 's32[2]{0}', space=sflag, size = 0x8, scoped, tag = 'scoped memory for tpu_custom_call.1']
    #allocation5 [shape = 'u8[1024]{0}', space=vmem, size = 0x400, scoped, tag = 'output window, operand 0']
    #allocation6 [shape = 'u8[1024]{0}', space=vmem, size = 0x400, scoped, tag = 'output window, operand 1']
    #allocation7 [shape = 's32[2]{0}', space=sflag, size = 0x8, scoped, tag = 'scoped memory for tpu_custom_call.1']
    %9 = vsyncpa [#allocation3], 0
    %s10 = scalar_lea.sflag [#allocation3], 1
    %11 = vsyncpa %s10, 0
    %12 = vsyncpa [#allocation4], 0
    %s13 = scalar_lea.sflag [#allocation4], 1
    %14 = vsyncpa %s13, 0
    %15 = vsyncpa [#allocation7], 0
    %s16 = scalar_lea.sflag [#allocation7], 1
    %17 = vsyncpa %s16, 0
    loop: start=0, step=1, limit=4
    $region2: #{tpu_custom_call.1} parent=1 // loop_pre_header
      _
    $region3: #{tpu_custom_call.1} parent=1 // loop_header
      %s19 = sphi 0, %s23
      %p20 = scmp.ge.s32.totalorder %s19, 4
      %s26 = sphi 0, %s38
      %s27 = sphi 0, %s34
      %s28 = sphi 0, %s26
      %s29 = sphi 0, %s27
      %s30 = sphi 0, %s28
      %s31 = sphi 0, %s29
      %s39 = sphi 0, %s39
      %s41 = sphi 0, %s39
      %s42 = sphi 0, %s41
      %s56 = sphi 0, %s42
      %s64 = sphi 0, %s66
      %s67 = sphi 0, %s64
      %s68 = sphi 0, %s67
      %s84 = sphi 0, %s68
      %s92 = sphi 0, %s94
      %s95 = sphi 0, %s92
      %s96 = sphi 0, %s95
      %s112 = sphi 0, %s96
      %s120 = sphi 0, %s122
      %s123 = sphi 0, %s120
      %s124 = sphi 0, %s123
      %s140 = sphi 0, %s124
    $region4: #{tpu_custom_call.1} parent=1 // loop_header_branch
      %22 = sbr.rel (%p20) target = $region8
    $region5: #{tpu_custom_call.1} parent=1 // loop_body
      %s24 = ssub.s32 %s19, 1
      %s25 = ssub.s32 %s19, 2
      %s32 = sadd.s32 1, %s27
      %p33 = scmp.ge.s32.totalorder %s32, 1
      %s34 = scalar_select %p33, 0, %s32
      %s35 = sadd.s32 1, %s26
      %s36 = scalar_select %p33, %s35, %s26
      %p37 = scmp.ge.s32.totalorder %s36, 2
      %s38 = scalar_select %p37, 0, %s36
      %s40 = sadd.s32 %s39, 1
      %p43 = scmp.eq.s32.totalorder %s19, 1
      %p44 = scmp.ne.s32.totalorder %s39, %s41
      %p45 = scmp.eq.s32.totalorder %s19, 0
      %p46 = por %p44, %p45
      %p47 = scmp.ne.s32.totalorder %s39, %s41
      %p48 = scmp.eq.s32.totalorder %s24, 1
      %p49 = por %p47, %p48
      %p50 = scmp.ne.s32.totalorder %s41, %s42
      %p51 = scmp.eq.s32.totalorder %s24, 0
      %p52 = por %p50, %p51
      %p53 = scmp.ne.s32.totalorder %s41, %s42
      %p54 = scmp.eq.s32.totalorder %s25, 1
      %p55 = por %p53, %p54
      %p57 = scmp.ne.s32.totalorder %s42, %s56
      %p58 = scmp.eq.s32.totalorder %s25, 0
      %p59 = por %p57, %p58
      %s60 = ssub.s32 %s26, %s38
      %s61 = ssub.s32 %s27, %s34
      %s62 = sor.u32 %s60, %s61
      %p63 = scmp.eq.s32.totalorder %s62, 0
      %s65 = sadd.s32 %s64, 1
      %s66 = scalar_select %p63, %s64, %s65
      %p69 = pneg %p63
      %p70 = scmp.eq.s32.totalorder %s19, 1
      %p71 = por %p69, %p70
      %p72 = scmp.ne.s32.totalorder %s64, %s67
      %p73 = scmp.eq.s32.totalorder %s19, 0
      %p74 = por %p72, %p73
      %p75 = scmp.ne.s32.totalorder %s64, %s67
      %p76 = scmp.eq.s32.totalorder %s24, 1
      %p77 = por %p75, %p76
      %p78 = scmp.ne.s32.totalorder %s67, %s68
      %p79 = scmp.eq.s32.totalorder %s24, 0
      %p80 = por %p78, %p79
      %p81 = scmp.ne.s32.totalorder %s67, %s68
      %p82 = scmp.eq.s32.totalorder %s25, 1
      %p83 = por %p81, %p82
      %p85 = scmp.ne.s32.totalorder %s68, %s84
      %p86 = scmp.eq.s32.totalorder %s25, 0
      %p87 = por %p85, %p86
      %s88 = ssub.s32 %s26, %s38
      %s89 = ssub.s32 %s27, %s34
      %s90 = sor.u32 %s88, %s89
      %p91 = scmp.eq.s32.totalorder %s90, 0
      %s93 = sadd.s32 %s92, 1
      %s94 = scalar_select %p91, %s92, %s93
      %p97 = pneg %p91
      %p98 = scmp.eq.s32.totalorder %s19, 1
      %p99 = por %p97, %p98
      %p100 = scmp.ne.s32.totalorder %s92, %s95
      %p101 = scmp.eq.s32.totalorder %s19, 0
      %p102 = por %p100, %p101
      %p103 = scmp.ne.s32.totalorder %s92, %s95
      %p104 = scmp.eq.s32.totalorder %s24, 1
      %p105 = por %p103, %p104
      %p106 = scmp.ne.s32.totalorder %s95, %s96
      %p107 = scmp.eq.s32.totalorder %s24, 0
      %p108 = por %p106, %p107
      %p109 = scmp.ne.s32.totalorder %s95, %s96
      %p110 = scmp.eq.s32.totalorder %s25, 1
      %p111 = por %p109, %p110
      %p113 = scmp.ne.s32.totalorder %s96, %s112
      %p114 = scmp.eq.s32.totalorder %s25, 0
      %p115 = por %p113, %p114
      %s116 = ssub.s32 %s26, %s38
      %s117 = ssub.s32 %s27, %s34
      %s118 = sor.u32 %s116, %s117
      %p119 = scmp.eq.s32.totalorder %s118, 0
      %s121 = sadd.s32 %s120, 1
      %s122 = scalar_select %p119, %s120, %s121
      %p125 = pneg %p119
      %p126 = scmp.eq.s32.totalorder %s19, 1
      %p127 = por %p125, %p126
      %p128 = scmp.ne.s32.totalorder %s120, %s123
      %p129 = scmp.eq.s32.totalorder %s19, 0
      %p130 = por %p128, %p129
      %p131 = scmp.ne.s32.totalorder %s120, %s123
      %p132 = scmp.eq.s32.totalorder %s24, 1
      %p133 = por %p131, %p132
      %p134 = scmp.ne.s32.totalorder %s123, %s124
      %p135 = scmp.eq.s32.totalorder %s24, 0
      %p136 = por %p134, %p135
      %p137 = scmp.ne.s32.totalorder %s123, %s124
      %p138 = scmp.eq.s32.totalorder %s25, 1
      %p139 = por %p137, %p138
      %p141 = scmp.ne.s32.totalorder %s124, %s140
      %p142 = scmp.eq.s32.totalorder %s25, 0
      %p143 = por %p141, %p142
      %p144 = scmp.le.s32.totalorder 1, %s19
      %p145 = scmp.lt.s32.totalorder %s19, 3
      %p146 = pnand %p144, %p145
      %p147 = pneg %p146
      // Predicated region
      $region9: #{tpu_custom_call.1} parent=5 // pred_check
        _
      $region10: #{tpu_custom_call.1} parent=5 // pred_check_branch
        %149 = sbr.rel (%p146) target = $region12
      $region11: #{tpu_custom_call.1} parent=5 // pred_region
        %s150 = ssub.s32 %s19, 1
        // Predicated region
        $region13: #{tpu_custom_call.1} parent=11 // pred_check
          %p151 = pneg %p52
        $region14: #{tpu_custom_call.1} parent=11 // pred_check_branch
          %153 = sbr.rel (%p151) target = $region16
        $region15: #{tpu_custom_call.1} parent=11 // pred_region
          _
        $region16: #{tpu_custom_call.1} parent=11 // pred_fallthru
          _
      $region12: #{tpu_custom_call.1} parent=5 // pred_fallthru
        _
      %p154 = scmp.lt.s32.totalorder %s19, 2
      // Predicated region
      $region17: #{tpu_custom_call.1} parent=5 // pred_check
        %p155 = pneg %p154
      $region18: #{tpu_custom_call.1} parent=5 // pred_check_branch
        %157 = sbr.rel (%p155) target = $region20
      $region19: #{tpu_custom_call.1} parent=5 // pred_region
        // Predicated region
        $region21: #{tpu_custom_call.1} parent=19 // pred_check
          %p158 = pneg %p74
        $region22: #{tpu_custom_call.1} parent=19 // pred_check_branch
          %160 = sbr.rel (%p158) target = $region24
        $region23: #{tpu_custom_call.1} parent=19 // pred_region
          %s161 = sand.u32 %s64, 1
          %s162 = scalar_lea.sflag [#allocation3], %s161
          %s163 = sand.u32 %s64, 1
          %s164 = smul.addr %s163, 32
          %s165 = scalar_lea.vmem [#allocation2], %s164
          %s167 = ssub.s32 512, 512
          %168 = vsyncadd %s162, %s167
          %s169 = smul.addr %s26, 4
          %s170 = sadd.s32 %s27, %s169
          %s171 = smul.addr %s170, 128
          %s172 = scalar_lea.hbm %s1, %s171
          %s173 = sshll.u32 %s165, 4
          %s174 = int_to_ptr.vmem [resolvable:$true] %s173
          %179 = dma.hbm_to_vmem [thread:$0]  %s172, 512, %s174, %s162, 128, 128, 8
        $region24: #{tpu_custom_call.1} parent=19 // pred_fallthru
          _
      $region20: #{tpu_custom_call.1} parent=5 // pred_fallthru
        _
      %p180 = scmp.le.s32.totalorder 1, %s19
      %p181 = scmp.lt.s32.totalorder %s19, 3
      %p182 = pnand %p180, %p181
      %p183 = pneg %p182
      // Predicated region
      $region25: #{tpu_custom_call.1} parent=5 // pred_check
        _
      $region26: #{tpu_custom_call.1} parent=5 // pred_check_branch
        %185 = sbr.rel (%p182) target = $region28
      $region27: #{tpu_custom_call.1} parent=5 // pred_region
        %s186 = ssub.s32 %s19, 1
        %s187 = sand.u32 %s67, 1
        %s188 = scalar_lea.sflag [#allocation3], %s187
        %s189 = sand.u32 %s67, 1
        %s190 = smul.addr %s189, 32
        %s191 = scalar_lea.vmem [#allocation2], %s190
        // Predicated region
        $region29: #{tpu_custom_call.1} parent=27 // pred_check
          %p192 = pneg %p80
        $region30: #{tpu_custom_call.1} parent=27 // pred_check_branch
          %194 = sbr.rel (%p192) target = $region32
        $region31: #{tpu_custom_call.1} parent=27 // pred_region
          %195 = dma.done %s188, 512
        $region32: #{tpu_custom_call.1} parent=27 // pred_fallthru
          _
        %p196 = pneg %p52
        %p197 = pneg %p49
        %s198 = sand.u32 %s67, 1
        %s199 = scalar_lea.sflag [#allocation3], %s198
        %s200 = sand.u32 %s67, 1
        %s201 = smul.addr %s200, 32
        %s202 = scalar_lea.vmem [#allocation2], %s201
        %p203 = pneg %p80
        %p204 = pneg %p77
        %p205 = pneg %p108
        %p206 = pneg %p105
        %s207 = sand.u32 %s95, 1
        %s208 = scalar_lea.sflag [#allocation4], %s207
        %s209 = sand.u32 %s95, 1
        %s210 = scalar_lea.vmem [#allocation5], %s209
        %p211 = pneg %p136
        %p212 = pneg %p133
        %s213 = sand.u32 %s123, 1
        %s214 = scalar_lea.sflag [#allocation7], %s213
        %s215 = sand.u32 %s123, 1
        %s216 = scalar_lea.vmem [#allocation6], %s215
        %v217 = vld [vmem:[%s191] sm:$0xff]
        %v218 = vld [vmem:[%s191 + $0x8] sm:$0xff]
        %v219 = vld [vmem:[%s191 + $0x10] sm:$0xff]
        %v220 = vld [vmem:[%s191 + $0x18] sm:$0xff]
        %v221 = vld [vmem:[%s0] sm:$0xff]
        %v222 = vld [vmem:[%s0 + $0x8] sm:$0xff]
        %v223 = vld [vmem:[%s0 + $0x10] sm:$0xff]
        %v224 = vld [vmem:[%s0 + $0x18] sm:$0xff]
        %v225 = vand.u32 2147483647, %v217
        %v226 = vand.u32 2147483647, %v218
        %v227 = vand.u32 2147483647, %v219
        %v228 = vand.u32 2147483647, %v220
        %vm229 = vcmp.ge.f32.partialorder %v217, 0.0
        %vm230 = vcmp.ge.f32.partialorder %v218, 0.0
        %vm231 = vcmp.ge.f32.partialorder %v219, 0.0
        %vm232 = vcmp.ge.f32.partialorder %v220, 0.0
        %v233 = vsel %vm229, 1.0, -1.0
        %v234 = vsel %vm230, 1.0, -1.0
        %v235 = vsel %vm231, 1.0, -1.0
        %v236 = vsel %vm232, 1.0, -1.0
        %vm237 = vcmp.ge.f32.partialorder %v225, 2.5e-09
        %vm238 = vcmp.ge.f32.partialorder %v226, 2.5e-09
        %vm239 = vcmp.ge.f32.partialorder %v227, 2.5e-09
        %vm240 = vcmp.ge.f32.partialorder %v228, 2.5e-09
        %242 = vset.pattern.permute.xlu0 0
        %243 = vperm.xlu0 %242, %v221
        %v244 = vpop.permute.xlu0 %243
        %247 = vset.pattern.permute.xlu0 0
        %248 = vperm.xlu0 %247, %v222
        %v249 = vpop.permute.xlu0 %248
        %252 = vset.pattern.permute.xlu0 0
        %253 = vperm.xlu0 %252, %v223
        %v254 = vpop.permute.xlu0 %253
        %257 = vset.pattern.permute.xlu0 0
        %258 = vperm.xlu0 %257, %v224
        %v259 = vpop.permute.xlu0 %258
        %v261 = vmul.f32 %v233, %v244
        %v262 = vmul.f32 %v234, %v249
        %v263 = vmul.f32 %v235, %v254
        %v264 = vmul.f32 %v236, %v259
        %265 = vset.pattern.permute.xlu0 2
        %266 = vperm.xlu0 %265, %v221
        %v267 = vpop.permute.xlu0 %266
        %269 = vset.pattern.permute.xlu0 2
        %270 = vperm.xlu0 %269, %v222
        %v271 = vpop.permute.xlu0 %270
        %273 = vset.pattern.permute.xlu0 2
        %274 = vperm.xlu0 %273, %v223
        %v275 = vpop.permute.xlu0 %274
        %277 = vset.pattern.permute.xlu0 2
        %278 = vperm.xlu0 %277, %v224
        %v279 = vpop.permute.xlu0 %278
        %v281 = vmul.f32 %v217, %v267
        %v282 = vmul.f32 %v218, %v271
        %v283 = vmul.f32 %v219, %v275
        %v284 = vmul.f32 %v220, %v279
        %v285 = vsel %vm237, %v261, %v281
        %v286 = vsel %vm238, %v262, %v282
        %v287 = vsel %vm239, %v263, %v283
        %v288 = vsel %vm240, %v264, %v284
        %vm289 = vcmp.ge.f32.partialorder %v225, 5e-09
        %vm290 = vcmp.ge.f32.partialorder %v226, 5e-09
        %vm291 = vcmp.ge.f32.partialorder %v227, 5e-09
        %vm292 = vcmp.ge.f32.partialorder %v228, 5e-09
        %293 = vset.pattern.permute.xlu0 1
        %294 = vperm.xlu0 %293, %v221
        %v295 = vpop.permute.xlu0 %294
        %297 = vset.pattern.permute.xlu0 1
        %298 = vperm.xlu0 %297, %v222
        %v299 = vpop.permute.xlu0 %298
        %301 = vset.pattern.permute.xlu0 1
        %302 = vperm.xlu0 %301, %v223
        %v303 = vpop.permute.xlu0 %302
        %305 = vset.pattern.permute.xlu0 1
        %306 = vperm.xlu0 %305, %v224
        %v307 = vpop.permute.xlu0 %306
        %v309 = vmul.f32 %v233, %v295
        %v310 = vmul.f32 %v234, %v299
        %v311 = vmul.f32 %v235, %v303
        %v312 = vmul.f32 %v236, %v307
        %313 = vset.pattern.permute.xlu0 3
        %314 = vperm.xlu0 %313, %v221
        %v315 = vpop.permute.xlu0 %314
        %317 = vset.pattern.permute.xlu0 3
        %318 = vperm.xlu0 %317, %v222
        %v319 = vpop.permute.xlu0 %318
        %321 = vset.pattern.permute.xlu0 3
        %322 = vperm.xlu0 %321, %v223
        %v323 = vpop.permute.xlu0 %322
        %325 = vset.pattern.permute.xlu0 3
        %326 = vperm.xlu0 %325, %v224
        %v327 = vpop.permute.xlu0 %326
        %v329 = vmul.f32 %v217, %v315
        %v330 = vmul.f32 %v218, %v319
        %v331 = vmul.f32 %v219, %v323
        %v332 = vmul.f32 %v220, %v327
        %v333 = vsel %vm289, %v309, %v329
        %v334 = vsel %vm290, %v310, %v330
        %v335 = vsel %vm291, %v311, %v331
        %v336 = vsel %vm292, %v312, %v332
        %v337 = vadd.f32 %v285, %v286
        %v338 = vadd.f32 %v337, %v287
        %v339 = vadd.f32 %v338, %v288
        %v340 = vrot.slane %v339, 4
        %v341 = vadd.f32 %v339, %v340
        %v342 = vrot.slane %v341, 2
        %v343 = vadd.f32 %v341, %v342
        %v344 = vrot.slane %v343, 1
        %v345 = vadd.f32 %v343, %v344
        %v346 = vmul.f32 %v345, 0.03125
        %v347 = vsub.f32 1.0, %v346
        %v348 = vadd.f32 %v333, %v334
        %v349 = vadd.f32 %v348, %v335
        %v350 = vadd.f32 %v349, %v336
        %v351 = vrot.slane %v350, 4
        %v352 = vadd.f32 %v350, %v351
        %v353 = vrot.slane %v352, 2
        %v354 = vadd.f32 %v352, %v353
        %v355 = vrot.slane %v354, 1
        %v356 = vadd.f32 %v354, %v355
        %v357 = vmul.f32 %v356, 0.03125
        %v358 = vsub.f32 1.0, %v357
        %v359 = vsub.f32 %v358, %v347
        %v360 = vmul.f32 %v359, 0.33333334
        %v361 = vrcp.pop %v360
        %v362 = vmul.f32 %v347, %v361
        %v363 = vlaneseq
        %v364 = vand.u32 %v363, 127
        %s365 = smul.u32 %s29, 128
        %v366 = vstv %s365
        %v367 = vadd.s32 %v366, %v364
        %vm368 = vcmp.lt.s32.totalorder %v367, 8
        %v369 = vsel %vm368, %v347, 0.0
        %v370 = vsel %vm368, %v362, 0.0
        %371 = vadd.xlane.f32.xlu0 %v369
        %v372 = vpop.xlane.xlu0 %371
        %373 = vadd.xlane.f32.xlu0 %v370
        %v374 = vpop.xlane.xlu0 %373
        %375 = vst [vmem:[%s210] sm:$0x1] %v372
        %376 = vst [vmem:[%s216] sm:$0x1] %v374
        %s377 = sand.u32 %s95, 1
        %s378 = scalar_lea.sflag [#allocation4], %s377
        %s379 = sand.u32 %s95, 1
        %s380 = scalar_lea.vmem [#allocation5], %s379
        %s381 = sand.u32 %s123, 1
        %s382 = scalar_lea.sflag [#allocation7], %s381
        %s383 = sand.u32 %s123, 1
        %s384 = scalar_lea.vmem [#allocation6], %s383
        // Predicated region
        $region33: #{tpu_custom_call.1} parent=27 // pred_check
          %p385 = pneg %p105
        $region34: #{tpu_custom_call.1} parent=27 // pred_check_branch
          %387 = sbr.rel (%p385) target = $region36
        $region35: #{tpu_custom_call.1} parent=27 // pred_region
          %s389 = ssub.s32 16, 16
          %390 = vsyncadd %s378, %s389
          %s391 = sadd.s32 %s29, %s28
          %s392 = smul.addr %s391, 16
          %s393 = scalar_lea.hbm %s2, %s392
          %s395 = sshll.u32 %s380, 4
          %s396 = int_to_ptr.vmem [resolvable:$true] %s395
          %398 = dma.vmem_to_hbm [thread:$0]  %s396, 16, %s393, %s378
        $region36: #{tpu_custom_call.1} parent=27 // pred_fallthru
          _
        // Predicated region
        $region37: #{tpu_custom_call.1} parent=27 // pred_check
          %p399 = pneg %p133
        $region38: #{tpu_custom_call.1} parent=27 // pred_check_branch
          %401 = sbr.rel (%p399) target = $region40
        $region39: #{tpu_custom_call.1} parent=27 // pred_region
          %s403 = ssub.s32 16, 16
          %404 = vsyncadd %s382, %s403
          %s405 = sadd.s32 %s29, %s28
          %s406 = smul.addr %s405, 16
          %s407 = scalar_lea.hbm %s3, %s406
          %s409 = sshll.u32 %s384, 4
          %s410 = int_to_ptr.vmem [resolvable:$true] %s409
          %412 = dma.vmem_to_hbm [thread:$0]  %s410, 16, %s407, %s382
        $region40: #{tpu_custom_call.1} parent=27 // pred_fallthru
          _
      $region28: #{tpu_custom_call.1} parent=5 // pred_fallthru
        _
      %p413 = scmp.le.s32.totalorder 2, %s19
      // Predicated region
      $region41: #{tpu_custom_call.1} parent=5 // pred_check
        %p414 = pneg %p413
      $region42: #{tpu_custom_call.1} parent=5 // pred_check_branch
        %416 = sbr.rel (%p414) target = $region44
      $region43: #{tpu_custom_call.1} parent=5 // pred_region
        %s417 = ssub.s32 %s19, 2
        // Predicated region
        $region45: #{tpu_custom_call.1} parent=43 // pred_check
          %p418 = pneg %p111
        $region46: #{tpu_custom_call.1} parent=43 // pred_check_branch
          %420 = sbr.rel (%p418) target = $region48
        $region47: #{tpu_custom_call.1} parent=43 // pred_region
          %s421 = sand.u32 %s96, 1
          %s422 = scalar_lea.sflag [#allocation4], %s421
          %s423 = sand.u32 %s96, 1
          %s424 = scalar_lea.vmem [#allocation5], %s423
          %425 = dma.done %s422, 16
        $region48: #{tpu_custom_call.1} parent=43 // pred_fallthru
          _
        // Predicated region
        $region49: #{tpu_custom_call.1} parent=43 // pred_check
          %p426 = pneg %p139
        $region50: #{tpu_custom_call.1} parent=43 // pred_check_branch
          %428 = sbr.rel (%p426) target = $region52
        $region51: #{tpu_custom_call.1} parent=43 // pred_region
          %s429 = sand.u32 %s124, 1
          %s430 = scalar_lea.sflag [#allocation7], %s429
          %s431 = sand.u32 %s124, 1
          %s432 = scalar_lea.vmem [#allocation6], %s431
          %433 = dma.done %s430, 16
        $region52: #{tpu_custom_call.1} parent=43 // pred_fallthru
          _
      $region44: #{tpu_custom_call.1} parent=5 // pred_fallthru
        _
    $region6: #{tpu_custom_call.1} parent=1 // loop_footer
      %s23 = sadd.s32 1, %s19
    $region7: #{tpu_custom_call.1} parent=1 // loop_footer_branch
      %18 = sbr.rel target = $region3
    $region8: #{tpu_custom_call.1} parent=1 // loop_exit
      _
    %434 = vsyncpa [#allocation3], 1
    %s435 = scalar_lea.sflag [#allocation3], 1
    %436 = vsyncpa %s435, 1
    %437 = vsyncpa [#allocation4], 1
    %s438 = scalar_lea.sflag [#allocation4], 1
    %439 = vsyncpa %s438, 1
    %440 = vsyncpa [#allocation7], 1
    %s441 = scalar_lea.sflag [#allocation7], 1
    %442 = vsyncpa %s441, 1

</llo_original>
